<compile_context>
chip_gen: v7x
topology: tpu7x:2x2x1
jax: 0.10.0
libtpu: 0.0.40
codegen_flags: <defaults>
</compile_context>

<pallas_src>
import jax
import jax.numpy as jnp
from jax.experimental import pallas as pl
from jax.experimental.pallas import tpu as pltpu

_ROW_ALIGN = 32                    # keeps packed dtypes (bf16/int8) tile-aligned
_MIN_PIPELINE_BYTES = 2 * 1024 * 1024   # below this a single block is fine


def _svi_kernel(params_ref, x_ref, o_ref):
    # params_ref lives in SMEM: [a, b, rho, m, sigma] (f32 scalars)
    a = params_ref[0]
    b = params_ref[1]
    rho = params_ref[2]
    m = params_ref[3]
    sigma = params_ref[4]

    x = x_ref[...].astype(jnp.float32)          # (block_rows, lanes) tile
    d = x - m
    w = a + b * (rho * d + jnp.sqrt(d * d + sigma * sigma))
    o_ref[...] = w.astype(o_ref.dtype)


def _svi_math(x, params_f32):
    """Plain-jnp SVI used for tiny misaligned tails and as the reference."""
    a, b, rho, m, sigma = (params_f32[i] for i in range(5))
    d = x.astype(jnp.float32) - m
    w = a + b * (rho * d + jnp.sqrt(d * d + sigma * sigma))
    return w.astype(x.dtype)


def _target_tile_bytes():
    """Per-input-buffer tile size.  Bigger on v7x-class chips (64 MiB VMEM,
    ~3.2 TB/s HBM -> per-step overhead is a larger fraction); 4 MiB elsewhere."""
    try:
        info = pltpu.get_tpu_info()
        vmem = getattr(info, "vmem_capacity_bytes", None)
        if vmem is not None and vmem <= 64 * 1024 * 1024:
            return 6 * 1024 * 1024
    except Exception:
        pass
    return 4 * 1024 * 1024


def _pick_block_rows(rows, lanes, itemsize):
    total_bytes = rows * lanes * itemsize
    if total_bytes <= _MIN_PIPELINE_BYTES or rows < 2 * _ROW_ALIGN:
        return rows                      # single full-extent block (always legal)

    target = _target_tile_bytes()
    block_rows = max(_ROW_ALIGN, target // (lanes * itemsize))
    # Keep >= ~4 grid steps so the pipeline double-buffers and both v7x
    # TensorCores get work even for mid-size inputs.
    block_rows = min(block_rows, max(_ROW_ALIGN, rows // 4))
    block_rows = max(_ROW_ALIGN, (block_rows // _ROW_ALIGN) * _ROW_ALIGN)
    if block_rows >= rows:
        return rows

    # Small odd grids leave one v7x core with an extra step: prefer even.
    g = pl.cdiv(rows, block_rows)
    if 2 < g < 16 and g % 2 == 1:
        br = pl.cdiv(rows, g + 1)
        br = max(_ROW_ALIGN, ((br + _ROW_ALIGN - 1) // _ROW_ALIGN) * _ROW_ALIGN)
        if br < rows and pl.cdiv(rows, br) % 2 == 0:
            block_rows = br
    return block_rows


def svi_forward(log_moneyness, params):
    """params: (5,) array [a, b, rho, m, sigma]. Returns same shape/dtype as input."""
    orig_shape = log_moneyness.shape
    orig_dtype = log_moneyness.dtype
    params_f32 = params.astype(jnp.float32)

    x = log_moneyness.reshape(-1)
    n = x.shape[0]
    if n == 0:
        return log_moneyness

    itemsize = jnp.dtype(orig_dtype).itemsize

    # Widest lane count that divides n -> lane-dense tiles, no tail at all.
    # Otherwise run the kernel on the lane-aligned prefix and compute the
    # (<lanes-element) tail with plain jnp (no full-array zero-pad / slice-out).
    lanes = None
    for cand in (1024, 512, 256, 128):
        if n % cand == 0:
            lanes = cand
            break
    if lanes is None:
        lanes = 512 if n >= 512 else 128

    rows = n // lanes
    n_main = rows * lanes

    pieces = []
    if rows > 0:
        x2d = x[:n_main].reshape(rows, lanes)
        block_rows = _pick_block_rows(rows, lanes, itemsize)
        grid = (pl.cdiv(rows, block_rows),)

        # Double-buffered input + output tiles (+ headroom); explicit so per-
        # generation tile bumps never trip the 16/32/32 MiB scoped defaults.
        tile_bytes = block_rows * lanes * itemsize
        vmem_limit = int(max(16 * 1024 * 1024, 4 * tile_bytes + (4 << 20)))

        out2d = pl.pallas_call(
            _svi_kernel,
            out_shape=jax.ShapeDtypeStruct((rows, lanes), orig_dtype),
            grid_spec=pl.GridSpec(
                grid=grid,
                in_specs=[
                    pl.BlockSpec(memory_space=pltpu.MemorySpace.SMEM),    # params (5,)
                    pl.BlockSpec((block_rows, lanes), lambda i: (i, 0)),  # x tile
                ],
                out_specs=pl.BlockSpec((block_rows, lanes), lambda i: (i, 0)),
            ),
            compiler_params=pltpu.CompilerParams(
                dimension_semantics=("parallel",),
                vmem_limit_bytes=vmem_limit,
            ),
        )(params_f32, x2d)
        pieces.append(out2d.reshape(-1))

    if n_main < n:
        pieces.append(_svi_math(x[n_main:], params_f32))

    out = pieces[0] if len(pieces) == 1 else jnp.concatenate(pieces)
    return out.reshape(orig_shape)


def svi_forward_ref(log_moneyness, params):
    return _svi_math(log_moneyness, params.astype(jnp.float32))


if __name__ == "__main__":
    key = jax.random.PRNGKey(0)

    # Deterministic parameter init matching nn.Module.__init__ defaults:
    # a=0.05, b=0.2, rho=0.0, m=0.0, sigma=0.1
    params = jnp.array([0.05, 0.2, 0.0, 0.0, 0.1], dtype=jnp.float32)

    # Small example input: a batch of log-moneyness values, shape (8, 32).
    k0, k1 = jax.random.split(key)
    log_moneyness = jax.random.uniform(
        k0, (8, 32), dtype=jnp.float32, minval=-0.5, maxval=0.5
    )

    out = svi_forward(log_moneyness, params)
    out = jax.block_until_ready(out)

    ref = svi_forward_ref(log_moneyness, params)
    assert out.shape == log_moneyness.shape
    assert out.dtype == log_moneyness.dtype
    assert jnp.allclose(out, ref, atol=1e-6, rtol=1e-6), "mismatch vs reference"

    # Also exercise the lane-misaligned (prefix + jnp-tail) path: 7*19 = 133.
    x_ragged = jax.random.uniform(
        k1, (7, 19), dtype=jnp.float32, minval=-0.5, maxval=0.5
    )
    out_r = jax.block_until_ready(svi_forward(x_ragged, params))
    ref_r = svi_forward_ref(x_ragged, params)
    assert out_r.shape == x_ragged.shape
    assert jnp.allclose(out_r, ref_r, atol=1e-6, rtol=1e-6), "mismatch (ragged)"

    print("KERNEL_OK")
</pallas_src>

<mosaic_0001>
module attributes {stable_mosaic.version = 11 : i64} {
  func.func @_svi_kernel(%arg0: i32, %arg1: memref<5xf32, #tpu.memory_space<smem>>, %arg2: memref<1x256xf32, #tpu.memory_space<vmem>>, %arg3: memref<1x256xf32, #tpu.memory_space<vmem>>) attributes {dimension_semantics = [#tpu.dimension_semantics<parallel>], iteration_bounds = array<i64: 1>, scalar_prefetch = 0 : i64, scratch_operands = 0 : i64, tpu.core_type = #tpu.core_type<tc>, window_params = [{transform_indices = @transform_0, window_bounds = array<i64: 5>}, {transform_indices = @transform_1, window_bounds = array<i64: 1, 256>}, {transform_indices = @transform_2, window_bounds = array<i64: 1, 256>}]} {
    %c0 = arith.constant 0 : index
    %0 = memref.load %arg1[%c0] : memref<5xf32, #tpu.memory_space<smem>>
    %c1 = arith.constant 1 : index
    %1 = memref.load %arg1[%c1] : memref<5xf32, #tpu.memory_space<smem>>
    %c2 = arith.constant 2 : index
    %2 = memref.load %arg1[%c2] : memref<5xf32, #tpu.memory_space<smem>>
    %c3 = arith.constant 3 : index
    %3 = memref.load %arg1[%c3] : memref<5xf32, #tpu.memory_space<smem>>
    %c4 = arith.constant 4 : index
    %4 = memref.load %arg1[%c4] : memref<5xf32, #tpu.memory_space<smem>>
    %c0_0 = arith.constant 0 : index
    %c0_1 = arith.constant 0 : index
    %5 = vector.load %arg2[%c0_0, %c0_1] : memref<1x256xf32, #tpu.memory_space<vmem>>, vector<1x256xf32>
    %6 = vector.broadcast %3 : f32 to vector<1x256xf32>
    %7 = arith.subf %5, %6 : vector<1x256xf32>
    %8 = vector.broadcast %2 : f32 to vector<1x256xf32>
    %9 = arith.mulf %8, %7 : vector<1x256xf32>
    %10 = arith.mulf %7, %7 : vector<1x256xf32>
    %11 = arith.mulf %4, %4 : f32
    %12 = vector.broadcast %11 : f32 to vector<1x256xf32>
    %13 = arith.addf %10, %12 : vector<1x256xf32>
    %14 = math.sqrt %13 : vector<1x256xf32>
    %15 = arith.addf %9, %14 : vector<1x256xf32>
    %16 = vector.broadcast %1 : f32 to vector<1x256xf32>
    %17 = arith.mulf %16, %15 : vector<1x256xf32>
    %18 = vector.broadcast %0 : f32 to vector<1x256xf32>
    %19 = arith.addf %18, %17 : vector<1x256xf32>
    %c0_2 = arith.constant 0 : index
    %c0_3 = arith.constant 0 : index
    %20 = vector.load %arg3[%c0_2, %c0_3] : memref<1x256xf32, #tpu.memory_space<vmem>>, vector<1x256xf32>
    tpu.vector_store %arg3[%c0_2, %c0_3], %19 {strides = array<i32>} : memref<1x256xf32, #tpu.memory_space<vmem>>, vector<1x256xf32>,
    return
  }
  func.func @transform_0(%arg0: i32) -> i32 {
    %c0_i32 = arith.constant 0 : i32
    %c0_i32_0 = arith.constant 0 : i32
    return %c0_i32 : i32
  }
  func.func @transform_1(%arg0: i32) -> (i32, i32) {
    %c0_i32 = arith.constant 0 : i32
    %c0_i32_0 = arith.constant 0 : i32
    return %arg0, %c0_i32 : i32, i32
  }
  func.func @transform_2(%arg0: i32) -> (i32, i32) {
    %c0_i32 = arith.constant 0 : i32
    %c0_i32_0 = arith.constant 0 : i32
    return %arg0, %c0_i32 : i32, i32
  }
}

</mosaic_0001>

<llo_original>
// kernel: tpu_custom_call.1
$region0: #{tpu_custom_call.1}
  #allocation0 [shape = 'u32[]', space=smem, size = 0x4, offset = 0x4, fixed_abs, tag = 'smem constant byte address 0x4 - core index']
  #allocation1 [shape = 'u32[144,128]{1,0:T(1,128)}', space=vmem, size = 0x12000, scoped, tag = 'internal scratch']
  %s0 = inlined_call_operand.hbm [shape: f32[5], index: 0, kind: input, shape index: {}]
  %s1 = inlined_call_operand.vmem [shape: f32[1,256], index: 1, kind: input, shape index: {}]
  %s2 = inlined_call_operand.hbm [shape: f32[1,256], index: 2, kind: output, shape index: {}]
  %s3 = sld [smem:[#allocation0]]
  $region22: #{tpu_custom_call.1} parent=0
    _
  %s5 = ssub.s32 1, %s3
  %s6 = scalar_select 0, %s5, %s3
  $region1: #{tpu_custom_call.1} parent=0
    #allocation2 [shape = 'u8[512]{0}', space=smem, size = 0x200, scoped, tag = 'input window, operand 0, single buffered']
    #allocation3 [shape = 's32[1]{0}', space=sflag, size = 0x4, scoped, tag = 'scoped memory for tpu_custom_call.1']
    #allocation4 [shape = 's32[1]{0}', space=sflag, size = 0x4, scoped, tag = 'scoped memory for tpu_custom_call.1']
    #allocation5 [shape = 'u8[1024]{0}', space=vmem, size = 0x400, scoped, tag = 'output window, operand 0, single buffered']
    %7 = vsyncpa [#allocation4], 0
    %8 = vsyncpa [#allocation3], 0
    // Predicated region
    $region2: #{tpu_custom_call.1} parent=1 // pred_check
      _
    $region3: #{tpu_custom_call.1} parent=1 // pred_check_branch
      %10 = sbr.rel (0) target = $region5
    $region4: #{tpu_custom_call.1} parent=1 // pred_region
      %s12 = ssub.s32 16, 16
      %13 = vsyncadd [#allocation4], %s12
      %16 = dma.hbm_to_smem %s0, 16, [#allocation2], [#allocation4]
    $region5: #{tpu_custom_call.1} parent=1 // pred_fallthru
      _
    // Predicated region
    $region6: #{tpu_custom_call.1} parent=1 // pred_check
      _
    $region7: #{tpu_custom_call.1} parent=1 // pred_check_branch
      %18 = sbr.rel (0) target = $region9
    $region8: #{tpu_custom_call.1} parent=1 // pred_region
      _
    $region9: #{tpu_custom_call.1} parent=1 // pred_fallthru
      _
    // Predicated region
    $region10: #{tpu_custom_call.1} parent=1 // pred_check
      _
    $region11: #{tpu_custom_call.1} parent=1 // pred_check_branch
      %20 = sbr.rel (0) target = $region13
    $region12: #{tpu_custom_call.1} parent=1 // pred_region
      %21 = dma.done [#allocation4], 16
    $region13: #{tpu_custom_call.1} parent=1 // pred_fallthru
      _
    %22 = sfence
    %s23 = sld [smem:[#allocation2]]
    %s24 = sld [smem:[#allocation2 + $0x1]]
    %s25 = sld [smem:[#allocation2 + $0x2]]
    %s26 = sld [smem:[#allocation2 + $0x3]]
    %s27 = sld [smem:[#allocation2 + $0x4]]
    %v28 = vld [vmem:[%s1] sm:$0x3]
    %v29 = vstv %s26
    %v30 = vsub.f32 %v28, %v29
    %v31 = vstv %s25
    %v32 = vmul.f32 %v31, %v30
    %v33 = vmul.f32 %v30, %v30
    %s34 = smul.f32 %s27, %s27
    %v35 = vstv %s34
    %v36 = vadd.f32 %v33, %v35
    %v37 = vrsqrt.pop %v36
    %v38 = vmul.f32 %v36, %v37
    %vm39 = vcmp.eq.f32.partialorder %v36, inf
    %v40 = vsel %vm39, %v36, %v38
    %vm41 = vcmp.eq.f32.partialorder %v36, 0.0
    %v42 = vand.u32 %v36, 2147483648
    %v43 = vsel %vm41, %v42, %v40
    %v44 = vadd.f32 %v32, %v43
    %v45 = vstv %s24
    %v46 = vmul.f32 %v45, %v44
    %v47 = vstv %s23
    %v48 = vadd.f32 %v47, %v46
    %v49 = vlaneseq
    %vm50 = vcmp.ge.s32.totalorder %v49, 0
    %vm51 = vcmp.lt.s32.totalorder %v49, 256
    %vm52 = vmand %vm50, %vm51
    %53 = vst.msk [vmem:[#allocation5] sm:$0x3] %vm52, %v48
    // Predicated region
    $region14: #{tpu_custom_call.1} parent=1 // pred_check
      _
    $region15: #{tpu_custom_call.1} parent=1 // pred_check_branch
      %55 = sbr.rel (0) target = $region17
    $region16: #{tpu_custom_call.1} parent=1 // pred_region
      %s57 = ssub.s32 32, 32
      %58 = vsyncadd [#allocation3], %s57
      %s60 = sshll.u32 [#allocation5], 4
      %s61 = int_to_ptr.vmem [resolvable:$true] %s60
      %63 = dma.vmem_to_hbm [thread:$0]  %s61, 32, %s2, [#allocation3]
    $region17: #{tpu_custom_call.1} parent=1 // pred_fallthru
      _
    // Predicated region
    $region18: #{tpu_custom_call.1} parent=1 // pred_check
      _
    $region19: #{tpu_custom_call.1} parent=1 // pred_check_branch
      %65 = sbr.rel (0) target = $region21
    $region20: #{tpu_custom_call.1} parent=1 // pred_region
      %66 = dma.done [#allocation3], 32
    $region21: #{tpu_custom_call.1} parent=1 // pred_fallthru
      _
    %67 = vsyncpa [#allocation3], 1
    %68 = vsyncpa [#allocation4], 1

</llo_original>
